<compile_context>
chip_gen: v6e
topology: v6e:2x2x1
jax: 0.10.0
libtpu: 0.0.40
codegen_flags: <defaults>
</compile_context>

<pallas_src>
import functools

import jax
import jax.numpy as jnp
from jax import lax
from jax.experimental import pallas as pl
from jax.experimental.pallas import tpu as pltpu

# Row squared-norm floor 1e-8 (norm floor 1e-4) so the product of two norms is
# floored at 1e-8, approximating torch.nn.CosineSimilarity(eps=1e-8).  (Torch
# clamps the *product* of the two norms; this differs only when exactly one of
# the two rows has a degenerately small norm.)
_SSQ_FLOOR = 1e-8


def _nt_xent_kernel(z_ref, q1_ref, q2_ref, out_ref, *, temperature, exp_dtype):
    """One row block of the NT-Xent loss (both views), reduced to a partial sum.

    z_ref  : (2B, D) bf16 pre-normalized keys (VMEM-resident, single-buffered).
    q1_ref : (tq, D) bf16 query rows from the z_i half.
    q2_ref : (tq, D) bf16 matching query rows from the z_j half.
    out_ref: (1, 1, 1) f32 partial sum of (lse - pos) over the 2*tq rows.
    """
    inv_t = jnp.float32(1.0 / temperature)
    z_all = z_ref[...]                                           # (2B, D) bf16

    def half_lse(q_bf):
        # One fused Gram panel vs. all 2B keys: bf16 operands, f32 MXU acc,
        # contraction on the feature dim of both operands (no transpose).
        s = lax.dot_general(q_bf, z_all, (((1,), (1,)), ((), ())),
                            preferred_element_type=jnp.float32)  # (tq, 2B)
        # Fixed-shift logsumexp: cosine sims <= 1, so the shift is sim == 1.
        # The (s - 1) * inv_t scaling rides free on the VPU; exp is the binder.
        p = jnp.exp(((s - 1.0) * inv_t).astype(exp_dtype)).astype(jnp.float32)
        sum_exp = jnp.sum(p, axis=-1, keepdims=True)             # (tq, 1)

        qf = q_bf.astype(jnp.float32)
        # Exact self-term: same bf16-rounded operands the MXU diagonal saw, so
        # the j == i contribution cancels exactly even at small temperature.
        self_sim = jnp.sum(qf * qf, axis=-1, keepdims=True)      # ~1.0
        self_term = jnp.exp(((self_sim - 1.0) * inv_t)
                            .astype(exp_dtype)).astype(jnp.float32)
        # Clamp guards the degenerate all-dissimilar / tiny-T underflow case.
        sum_exp = jnp.maximum(sum_exp - self_term, jnp.float32(1e-30))
        lse = inv_t + jnp.log(sum_exp)                           # (tq, 1)
        return jnp.sum(lse), qf

    lse1, q1f = half_lse(q1_ref[...])
    lse2, q2f = half_lse(q2_ref[...])

    # Positive logit per row: f32 row-wise dot of the matching pre-normalized
    # rows; identical for both halves, so it enters the block sum twice.
    pos_sum = inv_t * jnp.sum(q1f * q2f)

    out_ref[...] = jnp.full((1, 1, 1), lse1 + lse2 - 2.0 * pos_sum, jnp.float32)


def _pick_row_block(batch_size, max_block):
    for t in (256, 128, 64, 32, 16, 8):
        if t <= max_block and batch_size % t == 0:
            return t
    return batch_size


def _vmem_cap_bytes():
    try:
        return int(pltpu.get_tpu_info().vmem_capacity_bytes)
    except Exception:
        return 64 << 20            # conservative: v7x per-core VMEM


def _default_exp_dtype():
    # bf16 exp ~doubles EUP throughput on v6e/v7x; v5e and older have no bf16
    # EUP, so keep f32 there (per perf review).
    try:
        kind = jax.devices()[0].device_kind.lower()
    except Exception:
        return jnp.float32
    if any(tag in kind for tag in ("v2", "v3", "v4", "v5")):
        return jnp.float32
    return jnp.bfloat16


def nt_xent_loss(z_i, z_j, *, batch_size, temperature, max_row_block=128,
                 exp_dtype=None):
    """Pallas-backed NT_XentLoss.forward(z_i, z_j)."""
    assert z_i.ndim == 2 and z_i.shape == z_j.shape
    assert z_i.shape[0] == batch_size
    assert batch_size % 8 == 0, "batch_size must be a multiple of 8"
    B, D = z_i.shape
    N = 2 * B
    tq = _pick_row_block(B, max_row_block)
    n_blocks = B // tq
    if exp_dtype is None:
        exp_dtype = _default_exp_dtype()

    # Normalize once in the wrapper (one fused XLA op) and hand the kernel a
    # single pre-normalized bf16 key matrix; per-step rsqrt/cast work is gone.
    z = jnp.concatenate([z_i, z_j], axis=0).astype(jnp.float32)
    ssq = jnp.sum(z * z, axis=-1, keepdims=True)
    z_bf = (z * lax.rsqrt(jnp.maximum(ssq, jnp.float32(_SSQ_FLOOR)))
            ).astype(jnp.bfloat16)

    kernel = functools.partial(_nt_xent_kernel, temperature=float(temperature),
                               exp_dtype=exp_dtype)

    # Per-step VMEM: resident bf16 keys (single-buffered) + double-buffered
    # bf16 query blocks + f32 copies + similarity/exp panels + slack.
    est = 2 * N * D + 16 * tq * D + 16 * tq * N + (2 << 20)
    cp_kwargs = {"dimension_semantics": ("parallel",)}
    if est > (8 << 20):
        cap = _vmem_cap_bytes()
        # Never exceed physical VMEM minus headroom (v7x is only 64 MiB).
        cp_kwargs["vmem_limit_bytes"] = int(min(max(2 * est, 32 << 20),
                                                cap - (8 << 20)))

    per_block = pl.pallas_call(
        kernel,
        out_shape=jax.ShapeDtypeStruct((n_blocks, 1, 1), jnp.float32),
        grid_spec=pltpu.PrefetchScalarGridSpec(
            num_scalar_prefetch=0,
            grid=(n_blocks,),
            in_specs=[
                # Full key matrix, grid-invariant -> single-buffered.
                pl.BlockSpec((N, D), lambda bi: (0, 0),
                             pipeline_mode=pl.Buffered(1)),
                # Query row block from the z_i half.
                pl.BlockSpec((tq, D), lambda bi: (bi, 0)),
                # Matching query row block from the z_j half.
                pl.BlockSpec((tq, D), lambda bi: (bi + n_blocks, 0)),
            ],
            out_specs=pl.BlockSpec((1, 1, 1), lambda bi: (bi, 0, 0)),
        ),
        compiler_params=pltpu.CompilerParams(**cp_kwargs),
    )(z_bf, z_bf, z_bf)

    return jnp.sum(per_block) / jnp.float32(N)


def _reference_loss(z_i, z_j, temperature):
    """Pure-JAX (f32) reference mirroring the PyTorch module exactly."""
    z = jnp.concatenate([z_i, z_j], axis=0).astype(jnp.float32)
    n = z.shape[0]
    b = n // 2
    norms = jnp.sqrt(jnp.sum(z * z, axis=-1, keepdims=True))
    sim = (z @ z.T) / jnp.maximum(norms * norms.T, 1e-8) / temperature
    idx = jnp.arange(n)
    pos = sim[idx, (idx + b) % n]
    sim_nodiag = jnp.where(jnp.eye(n, dtype=bool), -jnp.inf, sim)
    lse = jax.scipy.special.logsumexp(sim_nodiag, axis=-1)
    return jnp.sum(lse - pos) / n


if __name__ == "__main__":
    batch_size = 32
    feat_dim = 64
    temperature = 0.5

    key = jax.random.PRNGKey(0)
    k1, k2 = jax.random.split(key)
    z_i = jax.random.normal(k1, (batch_size, feat_dim), dtype=jnp.float32)
    z_j = jax.random.normal(k2, (batch_size, feat_dim), dtype=jnp.float32)

    # max_row_block=16 exercises a 2-step grid (two partial sums) at demo size.
    loss = nt_xent_loss(z_i, z_j, batch_size=batch_size,
                        temperature=temperature, max_row_block=16)
    jax.block_until_ready(loss)

    ref = _reference_loss(z_i, z_j, temperature)
    # bf16 MXU operands (+ bf16 exp on v6e/v7x) => ~1e-3..1e-2 abs differences
    # on a loss of O(1..10).
    assert jnp.allclose(loss, ref, rtol=2e-2, atol=2e-3), (loss, ref)

    print("KERNEL_OK")
</pallas_src>

<mosaic_0001>
module attributes {stable_mosaic.version = 11 : i64} {
  func.func @_nt_xent_kernel(%arg0: i32, %arg1: memref<64x64xbf16, #tpu.memory_space<vmem>>, %arg2: memref<16x64xbf16, #tpu.memory_space<vmem>>, %arg3: memref<16x64xbf16, #tpu.memory_space<vmem>>, %arg4: memref<1x1x1xf32, #tpu.memory_space<vmem>>) attributes {dimension_semantics = [#tpu.dimension_semantics<parallel>], iteration_bounds = array<i64: 2>, scalar_prefetch = 0 : i64, scratch_operands = 0 : i64, tpu.core_type = #tpu.core_type<tc>, window_params = [{pipeline_mode = #tpu.pipeline_mode<synchronous>, transform_indices = @transform_0, window_bounds = array<i64: 64, 64>}, {transform_indices = @transform_1, window_bounds = array<i64: 16, 64>}, {transform_indices = @transform_2, window_bounds = array<i64: 16, 64>}, {transform_indices = @transform_3, window_bounds = array<i64: 1, 1, 1>}]} {
    %c0 = arith.constant 0 : index
    %c0_0 = arith.constant 0 : index
    %0 = vector.load %arg1[%c0, %c0_0] : memref<64x64xbf16, #tpu.memory_space<vmem>>, vector<64x64xbf16>
    %c0_1 = arith.constant 0 : index
    %c0_2 = arith.constant 0 : index
    %1 = vector.load %arg2[%c0_1, %c0_2] : memref<16x64xbf16, #tpu.memory_space<vmem>>, vector<16x64xbf16>
    %cst = arith.constant dense<0.000000e+00> : vector<16x64xf32>
    %2 = tpu.matmul %1, %0, %cst {dimension_numbers = #tpu.dot_dimension_numbers<[1], [1], [0], [0], [0, 0, 1, 0], [], []>} : vector<16x64xbf16>, vector<64x64xbf16>, vector<16x64xf32> -> vector<16x64xf32>
    %cst_3 = arith.constant 1.000000e+00 : f32
    %3 = vector.broadcast %cst_3 : f32 to vector<16x64xf32>
    %4 = arith.subf %2, %3 : vector<16x64xf32>
    %cst_4 = arith.constant 2.000000e+00 : f32
    %5 = vector.broadcast %cst_4 : f32 to vector<16x64xf32>
    %6 = arith.mulf %4, %5 : vector<16x64xf32>
    %7 = arith.truncf %6 : vector<16x64xf32> to vector<16x64xbf16>
    %8 = math.exp %7 : vector<16x64xbf16>
    %9 = arith.extf %8 : vector<16x64xbf16> to vector<16x64xf32>
    %cst_5 = arith.constant dense<0.000000e+00> : vector<16xf32>
    %10 = vector.multi_reduction <add>, %9, %cst_5 [1] : vector<16x64xf32> to vector<16xf32>
    %11 = vector.shape_cast %10 : vector<16xf32> to vector<16x1xf32>
    %12 = arith.extf %1 : vector<16x64xbf16> to vector<16x64xf32>
    %13 = arith.mulf %12, %12 : vector<16x64xf32>
    %cst_6 = arith.constant dense<0.000000e+00> : vector<16xf32>
    %14 = vector.multi_reduction <add>, %13, %cst_6 [1] : vector<16x64xf32> to vector<16xf32>
    %15 = vector.shape_cast %14 : vector<16xf32> to vector<16x1xf32>
    %cst_7 = arith.constant 1.000000e+00 : f32
    %16 = vector.broadcast %cst_7 : f32 to vector<16x1xf32>
    %17 = arith.subf %15, %16 : vector<16x1xf32>
    %cst_8 = arith.constant 2.000000e+00 : f32
    %18 = vector.broadcast %cst_8 : f32 to vector<16x1xf32>
    %19 = arith.mulf %17, %18 : vector<16x1xf32>
    %20 = arith.truncf %19 : vector<16x1xf32> to vector<16x1xbf16>
    %21 = math.exp %20 : vector<16x1xbf16>
    %22 = arith.extf %21 : vector<16x1xbf16> to vector<16x1xf32>
    %23 = arith.subf %11, %22 : vector<16x1xf32>
    %cst_9 = arith.constant 1.000000e-30 : f32
    %24 = vector.broadcast %cst_9 : f32 to vector<16x1xf32>
    %25 = arith.maximumf %23, %24 : vector<16x1xf32>
    %26 = math.log %25 : vector<16x1xf32>
    %cst_10 = arith.constant 2.000000e+00 : f32
    %27 = vector.broadcast %cst_10 : f32 to vector<16x1xf32>
    %28 = arith.addf %27, %26 : vector<16x1xf32>
    %29 = vector.shape_cast %28 : vector<16x1xf32> to vector<1x16x1xf32>
    %cst_11 = arith.constant dense<0.000000e+00> : vector<1xf32>
    %30 = vector.multi_reduction <add>, %29, %cst_11 [1, 2] : vector<1x16x1xf32> to vector<1xf32>
    %31 = vector.shape_cast %30 : vector<1xf32> to vector<1x1x1xf32>
    %32 = vector.extract %31[0, 0, 0] : f32 from vector<1x1x1xf32>
    %c0_12 = arith.constant 0 : index
    %c0_13 = arith.constant 0 : index
    %33 = vector.load %arg3[%c0_12, %c0_13] : memref<16x64xbf16, #tpu.memory_space<vmem>>, vector<16x64xbf16>
    %cst_14 = arith.constant dense<0.000000e+00> : vector<16x64xf32>
    %34 = tpu.matmul %33, %0, %cst_14 {dimension_numbers = #tpu.dot_dimension_numbers<[1], [1], [0], [0], [0, 0, 1, 0], [], []>} : vector<16x64xbf16>, vector<64x64xbf16>, vector<16x64xf32> -> vector<16x64xf32>
    %cst_15 = arith.constant 1.000000e+00 : f32
    %35 = vector.broadcast %cst_15 : f32 to vector<16x64xf32>
    %36 = arith.subf %34, %35 : vector<16x64xf32>
    %cst_16 = arith.constant 2.000000e+00 : f32
    %37 = vector.broadcast %cst_16 : f32 to vector<16x64xf32>
    %38 = arith.mulf %36, %37 : vector<16x64xf32>
    %39 = arith.truncf %38 : vector<16x64xf32> to vector<16x64xbf16>
    %40 = math.exp %39 : vector<16x64xbf16>
    %41 = arith.extf %40 : vector<16x64xbf16> to vector<16x64xf32>
    %cst_17 = arith.constant dense<0.000000e+00> : vector<16xf32>
    %42 = vector.multi_reduction <add>, %41, %cst_17 [1] : vector<16x64xf32> to vector<16xf32>
    %43 = vector.shape_cast %42 : vector<16xf32> to vector<16x1xf32>
    %44 = arith.extf %33 : vector<16x64xbf16> to vector<16x64xf32>
    %45 = arith.mulf %44, %44 : vector<16x64xf32>
    %cst_18 = arith.constant dense<0.000000e+00> : vector<16xf32>
    %46 = vector.multi_reduction <add>, %45, %cst_18 [1] : vector<16x64xf32> to vector<16xf32>
    %47 = vector.shape_cast %46 : vector<16xf32> to vector<16x1xf32>
    %cst_19 = arith.constant 1.000000e+00 : f32
    %48 = vector.broadcast %cst_19 : f32 to vector<16x1xf32>
    %49 = arith.subf %47, %48 : vector<16x1xf32>
    %cst_20 = arith.constant 2.000000e+00 : f32
    %50 = vector.broadcast %cst_20 : f32 to vector<16x1xf32>
    %51 = arith.mulf %49, %50 : vector<16x1xf32>
    %52 = arith.truncf %51 : vector<16x1xf32> to vector<16x1xbf16>
    %53 = math.exp %52 : vector<16x1xbf16>
    %54 = arith.extf %53 : vector<16x1xbf16> to vector<16x1xf32>
    %55 = arith.subf %43, %54 : vector<16x1xf32>
    %cst_21 = arith.constant 1.000000e-30 : f32
    %56 = vector.broadcast %cst_21 : f32 to vector<16x1xf32>
    %57 = arith.maximumf %55, %56 : vector<16x1xf32>
    %58 = math.log %57 : vector<16x1xf32>
    %cst_22 = arith.constant 2.000000e+00 : f32
    %59 = vector.broadcast %cst_22 : f32 to vector<16x1xf32>
    %60 = arith.addf %59, %58 : vector<16x1xf32>
    %61 = vector.shape_cast %60 : vector<16x1xf32> to vector<1x16x1xf32>
    %cst_23 = arith.constant dense<0.000000e+00> : vector<1xf32>
    %62 = vector.multi_reduction <add>, %61, %cst_23 [1, 2] : vector<1x16x1xf32> to vector<1xf32>
    %63 = vector.shape_cast %62 : vector<1xf32> to vector<1x1x1xf32>
    %64 = vector.extract %63[0, 0, 0] : f32 from vector<1x1x1xf32>
    %65 = arith.mulf %12, %44 : vector<16x64xf32>
    %66 = vector.shape_cast %65 : vector<16x64xf32> to vector<1x16x64xf32>
    %cst_24 = arith.constant dense<0.000000e+00> : vector<1xf32>
    %67 = vector.multi_reduction <add>, %66, %cst_24 [1, 2] : vector<1x16x64xf32> to vector<1xf32>
    %68 = vector.shape_cast %67 : vector<1xf32> to vector<1x1x1xf32>
    %69 = vector.extract %68[0, 0, 0] : f32 from vector<1x1x1xf32>
    %cst_25 = arith.constant 2.000000e+00 : f32
    %70 = arith.mulf %cst_25, %69 : f32
    %71 = arith.addf %32, %64 : f32
    %cst_26 = arith.constant 2.000000e+00 : f32
    %72 = arith.mulf %cst_26, %70 : f32
    %73 = arith.subf %71, %72 : f32
    %74 = vector.broadcast %73 : f32 to vector<1x1x1xf32>
    %c0_27 = arith.constant 0 : index
    %c0_28 = arith.constant 0 : index
    %c0_29 = arith.constant 0 : index
    %75 = vector.load %arg4[%c0_27, %c0_28, %c0_29] : memref<1x1x1xf32, #tpu.memory_space<vmem>>, vector<1x1x1xf32>
    tpu.vector_store %arg4[%c0_27, %c0_28, %c0_29], %74 {strides = array<i32>} : memref<1x1x1xf32, #tpu.memory_space<vmem>>, vector<1x1x1xf32>,
    return
  }
  func.func @transform_0(%arg0: i32) -> (i32, i32) {
    %c0_i32 = arith.constant 0 : i32
    %c0_i32_0 = arith.constant 0 : i32
    %c0_i32_1 = arith.constant 0 : i32
    return %c0_i32, %c0_i32_0 : i32, i32
  }
  func.func @transform_1(%arg0: i32) -> (i32, i32) {
    %c0_i32 = arith.constant 0 : i32
    %c0_i32_0 = arith.constant 0 : i32
    return %arg0, %c0_i32 : i32, i32
  }
  func.func @transform_2(%arg0: i32) -> (i32, i32) {
    %c2_i32 = arith.constant 2 : i32
    %0 = arith.addi %arg0, %c2_i32 : i32
    %c0_i32 = arith.constant 0 : i32
    %c0_i32_0 = arith.constant 0 : i32
    return %0, %c0_i32 : i32, i32
  }
  func.func @transform_3(%arg0: i32) -> (i32, i32, i32) {
    %c0_i32 = arith.constant 0 : i32
    %c0_i32_0 = arith.constant 0 : i32
    %c0_i32_1 = arith.constant 0 : i32
    return %arg0, %c0_i32, %c0_i32_0 : i32, i32, i32
  }
}

</mosaic_0001>

<llo_original>
// kernel: tpu_custom_call.1
$region0: #{tpu_custom_call.1}
  #allocation0 [shape = 'u32[]', space=smem, size = 0x4, offset = 0x4, fixed_abs, tag = 'smem constant byte address 0x4 - core index']
  #allocation1 [shape = 'u32[144,128]{1,0:T(1,128)}', space=vmem, size = 0x12000, scoped, tag = 'internal scratch']
  %s0 = inlined_call_operand.hbm [shape: bf16[64,64], index: 0, kind: input, shape index: {}]
  %s1 = inlined_call_operand.hbm [shape: bf16[64,64], index: 1, kind: input, shape index: {}]
  %s2 = inlined_call_operand.hbm [shape: bf16[64,64], index: 2, kind: input, shape index: {}]
  %s3 = inlined_call_operand.vmem [shape: f32[2,1,1], index: 3, kind: output, shape index: {}]
  %s4 = sld [smem:[#allocation0]]
  $region57: #{tpu_custom_call.1} parent=0
    _
  %s6 = ssub.s32 1, %s4
  %s7 = scalar_select 0, %s6, %s4
  $region1: #{tpu_custom_call.1} parent=0
    #allocation2 [shape = 'u8[16384]{0}', space=vmem, size = 0x4000, scoped, tag = 'input window, operand 0, single buffered']
    #allocation3 [shape = 's32[2]{0}', space=sflag, size = 0x8, scoped, tag = 'scoped memory for tpu_custom_call.1']
    #allocation4 [shape = 'u8[8192]{0}', space=vmem, size = 0x2000, scoped, tag = 'input window, operand 1']
    #allocation5 [shape = 's32[2]{0}', space=sflag, size = 0x8, scoped, tag = 'scoped memory for tpu_custom_call.1']
    #allocation6 [shape = 'u8[8192]{0}', space=vmem, size = 0x2000, scoped, tag = 'input window, operand 2']
    %8 = vsyncpa [#allocation3], 0
    %9 = vsyncpa [#allocation5], 0
    %s10 = scalar_lea.sflag [#allocation5], 1
    %11 = vsyncpa %s10, 0
    loop: start=0, step=1, limit=4
    $region2: #{tpu_custom_call.1} parent=1 // loop_pre_header
      _
    $region3: #{tpu_custom_call.1} parent=1 // loop_header
      %s13 = sphi 0, %s17
      %p14 = scmp.ge.s32.totalorder %s13, 4
      %s21 = sphi 0, %s21
      %s23 = sphi 0, %s21
      %s24 = sphi 0, %s23
      %s38 = sphi 0, %s24
      %s44 = sphi 0, %s46
      %s47 = sphi 0, %s44
      %s48 = sphi 0, %s47
      %s64 = sphi 0, %s48
      %s72 = sphi 0, %s74
      %s75 = sphi 0, %s72
      %s76 = sphi 0, %s75
      %s92 = sphi 0, %s76
      %s98 = sphi 0, %s100
      %s101 = sphi 0, %s98
      %s102 = sphi 0, %s101
      %s118 = sphi 0, %s102
    $region4: #{tpu_custom_call.1} parent=1 // loop_header_branch
      %16 = sbr.rel (%p14) target = $region8
    $region5: #{tpu_custom_call.1} parent=1 // loop_body
      %s18 = ssub.s32 %s13, 1
      %s19 = ssub.s32 %s13, 2
      %s20 = sadd.s32 %s13, 1
      %s22 = sadd.s32 %s21, 1
      %p25 = scmp.eq.s32.totalorder %s13, 1
      %p26 = scmp.ne.s32.totalorder %s21, %s23
      %p27 = scmp.eq.s32.totalorder %s13, 0
      %p28 = por %p26, %p27
      %p29 = scmp.ne.s32.totalorder %s21, %s23
      %p30 = scmp.eq.s32.totalorder %s18, 1
      %p31 = por %p29, %p30
      %p32 = scmp.ne.s32.totalorder %s23, %s24
      %p33 = scmp.eq.s32.totalorder %s18, 0
      %p34 = por %p32, %p33
      %p35 = scmp.ne.s32.totalorder %s23, %s24
      %p36 = scmp.eq.s32.totalorder %s19, 1
      %p37 = por %p35, %p36
      %p39 = scmp.ne.s32.totalorder %s24, %s38
      %p40 = scmp.eq.s32.totalorder %s19, 0
      %p41 = por %p39, %p40
      %s42 = ssub.s32 %s13, %s20
      %p43 = scmp.eq.s32.totalorder %s42, 0
      %s45 = sadd.s32 %s44, 1
      %s46 = scalar_select %p43, %s44, %s45
      %p49 = pneg %p43
      %p50 = scmp.eq.s32.totalorder %s13, 1
      %p51 = por %p49, %p50
      %p52 = scmp.ne.s32.totalorder %s44, %s47
      %p53 = scmp.eq.s32.totalorder %s13, 0
      %p54 = por %p52, %p53
      %p55 = scmp.ne.s32.totalorder %s44, %s47
      %p56 = scmp.eq.s32.totalorder %s18, 1
      %p57 = por %p55, %p56
      %p58 = scmp.ne.s32.totalorder %s47, %s48
      %p59 = scmp.eq.s32.totalorder %s18, 0
      %p60 = por %p58, %p59
      %p61 = scmp.ne.s32.totalorder %s47, %s48
      %p62 = scmp.eq.s32.totalorder %s19, 1
      %p63 = por %p61, %p62
      %p65 = scmp.ne.s32.totalorder %s48, %s64
      %p66 = scmp.eq.s32.totalorder %s19, 0
      %p67 = por %p65, %p66
      %s68 = sadd.s32 %s13, 2
      %s69 = sadd.s32 %s20, 2
      %s70 = ssub.s32 %s68, %s69
      %p71 = scmp.eq.s32.totalorder %s70, 0
      %s73 = sadd.s32 %s72, 1
      %s74 = scalar_select %p71, %s72, %s73
      %p77 = pneg %p71
      %p78 = scmp.eq.s32.totalorder %s13, 1
      %p79 = por %p77, %p78
      %p80 = scmp.ne.s32.totalorder %s72, %s75
      %p81 = scmp.eq.s32.totalorder %s13, 0
      %p82 = por %p80, %p81
      %p83 = scmp.ne.s32.totalorder %s72, %s75
      %p84 = scmp.eq.s32.totalorder %s18, 1
      %p85 = por %p83, %p84
      %p86 = scmp.ne.s32.totalorder %s75, %s76
      %p87 = scmp.eq.s32.totalorder %s18, 0
      %p88 = por %p86, %p87
      %p89 = scmp.ne.s32.totalorder %s75, %s76
      %p90 = scmp.eq.s32.totalorder %s19, 1
      %p91 = por %p89, %p90
      %p93 = scmp.ne.s32.totalorder %s76, %s92
      %p94 = scmp.eq.s32.totalorder %s19, 0
      %p95 = por %p93, %p94
      %s96 = ssub.s32 %s13, %s20
      %p97 = scmp.eq.s32.totalorder %s96, 0
      %s99 = sadd.s32 %s98, 1
      %s100 = scalar_select %p97, %s98, %s99
      %p103 = pneg %p97
      %p104 = scmp.eq.s32.totalorder %s13, 1
      %p105 = por %p103, %p104
      %p106 = scmp.ne.s32.totalorder %s98, %s101
      %p107 = scmp.eq.s32.totalorder %s13, 0
      %p108 = por %p106, %p107
      %p109 = scmp.ne.s32.totalorder %s98, %s101
      %p110 = scmp.eq.s32.totalorder %s18, 1
      %p111 = por %p109, %p110
      %p112 = scmp.ne.s32.totalorder %s101, %s102
      %p113 = scmp.eq.s32.totalorder %s18, 0
      %p114 = por %p112, %p113
      %p115 = scmp.ne.s32.totalorder %s101, %s102
      %p116 = scmp.eq.s32.totalorder %s19, 1
      %p117 = por %p115, %p116
      %p119 = scmp.ne.s32.totalorder %s102, %s118
      %p120 = scmp.eq.s32.totalorder %s19, 0
      %p121 = por %p119, %p120
      %p122 = scmp.le.s32.totalorder 1, %s13
      %p123 = scmp.lt.s32.totalorder %s13, 3
      %p124 = pnand %p122, %p123
      %p125 = pneg %p124
      // Predicated region
      $region9: #{tpu_custom_call.1} parent=5 // pred_check
        _
      $region10: #{tpu_custom_call.1} parent=5 // pred_check_branch
        %127 = sbr.rel (%p124) target = $region12
      $region11: #{tpu_custom_call.1} parent=5 // pred_region
        %s128 = ssub.s32 %s13, 1
        // Predicated region
        $region13: #{tpu_custom_call.1} parent=11 // pred_check
          %p129 = pneg %p34
        $region14: #{tpu_custom_call.1} parent=11 // pred_check_branch
          %131 = sbr.rel (%p129) target = $region16
        $region15: #{tpu_custom_call.1} parent=11 // pred_region
          %s133 = ssub.s32 512, 512
          %134 = vsyncadd [#allocation3], %s133
          %s135 = sshll.u32 [#allocation2], 4
          %s136 = int_to_ptr.vmem [resolvable:$true] %s135
          %141 = dma.hbm_to_vmem [thread:$0]  %s0, 512, %s136, [#allocation3], 64, 64, 4
        $region16: #{tpu_custom_call.1} parent=11 // pred_fallthru
          _
      $region12: #{tpu_custom_call.1} parent=5 // pred_fallthru
        _
      %p142 = scmp.lt.s32.totalorder %s13, 2
      // Predicated region
      $region17: #{tpu_custom_call.1} parent=5 // pred_check
        %p143 = pneg %p142
      $region18: #{tpu_custom_call.1} parent=5 // pred_check_branch
        %145 = sbr.rel (%p143) target = $region20
      $region19: #{tpu_custom_call.1} parent=5 // pred_region
        // Predicated region
        $region21: #{tpu_custom_call.1} parent=19 // pred_check
          %p146 = pneg %p54
        $region22: #{tpu_custom_call.1} parent=19 // pred_check_branch
          %148 = sbr.rel (%p146) target = $region24
        $region23: #{tpu_custom_call.1} parent=19 // pred_region
          %s149 = sand.u32 %s13, 1
          %s150 = scalar_lea.sflag [#allocation5], %s149
          %s151 = sand.u32 %s44, 1
          %s152 = smul.addr %s151, 8
          %s153 = scalar_lea.vmem [#allocation4], %s152
          %s154 = smul.u32 2, %s13
          %s156 = ssub.s32 128, 128
          %157 = vsyncadd %s150, %s156
          %s158 = smul.addr %s154, 64
          %s159 = scalar_lea.hbm %s1, %s158
          %s160 = sshll.u32 %s153, 4
          %s161 = int_to_ptr.vmem [resolvable:$true] %s160
          %166 = dma.hbm_to_vmem [thread:$0]  %s159, 128, %s161, %s150, 64, 64, 4
        $region24: #{tpu_custom_call.1} parent=19 // pred_fallthru
          _
        // Predicated region
        $region25: #{tpu_custom_call.1} parent=19 // pred_check
          %p167 = pneg %p82
        $region26: #{tpu_custom_call.1} parent=19 // pred_check_branch
          %169 = sbr.rel (%p167) target = $region28
        $region27: #{tpu_custom_call.1} parent=19 // pred_region
          %s170 = sand.u32 %s13, 1
          %s171 = scalar_lea.sflag [#allocation5], %s170
          %s172 = sand.u32 %s72, 1
          %s173 = smul.addr %s172, 8
          %s174 = scalar_lea.vmem [#allocation6], %s173
          %s175 = sadd.s32 %s13, 2
          %s176 = smul.u32 2, %s175
          %s178 = ssub.s32 128, 128
          %179 = vsyncadd %s171, %s178
          %s180 = smul.addr %s176, 64
          %s181 = scalar_lea.hbm %s2, %s180
          %s182 = sshll.u32 %s174, 4
          %s183 = int_to_ptr.vmem [resolvable:$true] %s182
          %188 = dma.hbm_to_vmem [thread:$0]  %s181, 128, %s183, %s171, 64, 64, 4
        $region28: #{tpu_custom_call.1} parent=19 // pred_fallthru
          _
      $region20: #{tpu_custom_call.1} parent=5 // pred_fallthru
        _
      %p189 = scmp.le.s32.totalorder 1, %s13
      %p190 = scmp.lt.s32.totalorder %s13, 3
      %p191 = pnand %p189, %p190
      %p192 = pneg %p191
      // Predicated region
      $region29: #{tpu_custom_call.1} parent=5 // pred_check
        _
      $region30: #{tpu_custom_call.1} parent=5 // pred_check_branch
        %194 = sbr.rel (%p191) target = $region32
      $region31: #{tpu_custom_call.1} parent=5 // pred_region
        %s195 = ssub.s32 %s13, 1
        // Predicated region
        $region33: #{tpu_custom_call.1} parent=31 // pred_check
          %p196 = pneg %p34
        $region34: #{tpu_custom_call.1} parent=31 // pred_check_branch
          %198 = sbr.rel (%p196) target = $region36
        $region35: #{tpu_custom_call.1} parent=31 // pred_region
          %199 = dma.done [#allocation3], 512
        $region36: #{tpu_custom_call.1} parent=31 // pred_fallthru
          _
        %s200 = sand.u32 %s18, 1
        %s201 = scalar_lea.sflag [#allocation5], %s200
        %s202 = sand.u32 %s47, 1
        %s203 = smul.addr %s202, 8
        %s204 = scalar_lea.vmem [#allocation4], %s203
        // Predicated region
        $region37: #{tpu_custom_call.1} parent=31 // pred_check
          %p205 = pneg %p60
        $region38: #{tpu_custom_call.1} parent=31 // pred_check_branch
          %207 = sbr.rel (%p205) target = $region40
        $region39: #{tpu_custom_call.1} parent=31 // pred_region
          %208 = dma.done %s201, 128
        $region40: #{tpu_custom_call.1} parent=31 // pred_fallthru
          _
        %s209 = sand.u32 %s18, 1
        %s210 = scalar_lea.sflag [#allocation5], %s209
        %s211 = sand.u32 %s75, 1
        %s212 = smul.addr %s211, 8
        %s213 = scalar_lea.vmem [#allocation6], %s212
        // Predicated region
        $region41: #{tpu_custom_call.1} parent=31 // pred_check
          %p214 = pneg %p88
        $region42: #{tpu_custom_call.1} parent=31 // pred_check_branch
          %216 = sbr.rel (%p214) target = $region44
        $region43: #{tpu_custom_call.1} parent=31 // pred_region
          %217 = dma.done %s210, 128
        $region44: #{tpu_custom_call.1} parent=31 // pred_fallthru
          _
        %p218 = pneg %p34
        %p219 = pneg %p31
        %s220 = sand.u32 %s18, 1
        %s221 = scalar_lea.sflag [#allocation5], %s220
        %s222 = sand.u32 %s47, 1
        %s223 = smul.addr %s222, 8
        %s224 = scalar_lea.vmem [#allocation4], %s223
        %p225 = pneg %p60
        %p226 = pneg %p57
        %s227 = sand.u32 %s18, 1
        %s228 = scalar_lea.sflag [#allocation5], %s227
        %s229 = sand.u32 %s75, 1
        %s230 = smul.addr %s229, 8
        %s231 = scalar_lea.vmem [#allocation6], %s230
        %p232 = pneg %p88
        %p233 = pneg %p85
        %p234 = pneg %p114
        %p235 = pneg %p111
        %p236 = scmp.lt.s32.totalorder %s18, 1
        %s237 = scalar_select %p236, %s18, 1
        %s238 = scalar_lea.vmem %s3, %s237
        %s239 = smul.u32 2, %s18
        %s240 = sadd.s32 %s18, 2
        %s241 = smul.u32 2, %s240
        %p242 = scmp.lt.s32.totalorder %s18, 1
        %s243 = scalar_select %p242, %s18, 1
        %s244 = scalar_lea.vmem %s3, %s243
        %v246 = vld [vmem:[#allocation2] sm:$0xf]
        %v247 = vld [vmem:[#allocation2 + $0x4] sm:$0xf]
        %v248 = vld [vmem:[#allocation2 + $0x8] sm:$0xf]
        %v249 = vld [vmem:[#allocation2 + $0xc] sm:$0xf]
        %v250 = vld [vmem:[#allocation2 + $0x10] sm:$0xf]
        %v251 = vld [vmem:[#allocation2 + $0x14] sm:$0xf]
        %v252 = vld [vmem:[#allocation2 + $0x18] sm:$0xf]
        %v253 = vld [vmem:[#allocation2 + $0x1c] sm:$0xf]
        %v254 = vld [vmem:[%s204] sm:$0xf]
        %v255 = vld [vmem:[%s204 + $0x4] sm:$0xf]
        %v258 = vunpack.c.l.b16 %v254
        %v259 = vunpack.c.l.b16 %v255
        %v260 = vpack.c.b16 %v259, %v258
        %v269 = vunpack.c.l.b16 %v246
        %v270 = vunpack.c.l.b16 %v247
        %v271 = vunpack.c.l.b16 %v248
        %v272 = vunpack.c.l.b16 %v249
        %v273 = vunpack.c.l.b16 %v250
        %v274 = vunpack.c.l.b16 %v251
        %v275 = vunpack.c.l.b16 %v252
        %v276 = vunpack.c.l.b16 %v253
        %v277 = vpack.c.b16 %v270, %v269
        %v278 = vpack.c.b16 %v272, %v271
        %v279 = vpack.c.b16 %v274, %v273
        %v280 = vpack.c.b16 %v276, %v275
        %vm281 = vcmask 523264
        %v283 = vsel %vm281, %v260, 0
        %v286 = vsel %vm281, %v277, 0
        %v289 = vsel %vm281, %v278, 0
        %v292 = vsel %vm281, %v279, 0
        %v295 = vsel %vm281, %v280, 0
        %297 = vmatprep.subr.bf16.mxu0 0
        %298 = vmatpush1.bf16.xpose.msra.mxu0 0
        %299 = vmatprep.subr.bf16.mxu0 0
        %300 = vmatpush1.bf16.xpose.msra.mxu0 0
        %301 = vmatprep.subr.bf16.mxu0 0
        %302 = vmatpush1.bf16.xpose.msra.mxu0 0
        %303 = vmatprep.subr.bf16.mxu0 0
        %304 = vmatpush1.bf16.xpose.msra.mxu0 0
        %305 = vmatprep.subr.bf16.mxu0 0
        %306 = vmatpush1.bf16.xpose.msra.mxu0 %v295
        %307 = vmatprep.subr.bf16.mxu0 0
        %308 = vmatpush1.bf16.xpose.msra.mxu0 %v292
        %309 = vmatprep.subr.bf16.mxu0 0
        %310 = vmatpush1.bf16.xpose.msra.mxu0 %v289
        %311 = vmatprep.subr.bf16.mxu0 0
        %312 = vmatpush1.bf16.xpose.msra.mxu0 %v286
        %313 = vmatprep.subr.bf16.mxu0 0
        %314 = vmatpush2.bf16.xpose.msra.mxu0 0
        %315 = vmatprep.subr.bf16.mxu0 0
        %316 = vmatpush2.bf16.xpose.msra.mxu0 0
        %317 = vmatprep.subr.bf16.mxu0 0
        %318 = vmatpush2.bf16.xpose.msra.mxu0 0
        %319 = vmatprep.subr.bf16.mxu0 0
        %320 = vmatpush2.bf16.xpose.msra.mxu0 0
        %321 = vmatprep.subr.bf16.mxu0 0
        %322 = vmatpush2.bf16.xpose.msra.mxu0 0
        %323 = vmatprep.subr.bf16.mxu0 0
        %324 = vmatpush2.bf16.xpose.msra.mxu0 0
        %325 = vmatprep.subr.bf16.mxu0 0
        %326 = vmatpush2.bf16.xpose.msra.mxu0 0
        %327 = vmatprep.subr.bf16.mxu0 0
        %328 = vmatpush2.bf16.xpose.msra.mxu0 0
        %329 = vmatprep.mubr.bf16.mxu0 0
        %330 = vmatmul.mubr.bf16.gmra.mxu0 %v283
        %v331 = vpop.f32.mrf.mxu0
        %v332 = vadd.f32 0.0, %v331
        %v333 = vpop.f32.mrf.mxu0
        %v334 = vpop.f32.mrf.mxu0
        %v335 = vadd.f32 0.0, %v334
        %v336 = vpop.f32.mrf.mxu0
        %337 = vdwg.mxu0
        %v338 = vsub.f32 %v332, 1.0
        %v339 = vsub.f32 %v335, 1.0
        %v340 = vmul.f32 %v338, 2.0
        %v341 = vmul.f32 %v339, 2.0
        %v342 = vpack.c.bf16 %v341, %v340
        %v344 = vmul.bf16 %v342, 1069105081
        %v345 = vpow.bf16.pop %v344
        %v346 = vunpack.c.l.bf16 %v345
        %v347 = vunpack.c.h.bf16 %v345
        %v348 = vsel %vm281, %v346, 0.0
        %349 = vadd.xlane.f32.xlu0 %v348
        %v350 = vpop.xlane.xlu0 %349
        %v351 = vsel %vm281, %v347, 0.0
        %352 = vadd.xlane.f32.xlu0 %v351
        %v353 = vpop.xlane.xlu0 %352
        %v354 = vunpack.c.l.bf16 %v254
        %v355 = vunpack.c.l.bf16 %v255
        %v356 = vmul.f32 %v354, %v354
        %v357 = vmul.f32 %v355, %v355
        %v358 = vsel %vm281, %v356, 0.0
        %359 = vadd.xlane.f32.xlu0 %v358
        %v360 = vpop.xlane.xlu0 %359
        %v361 = vsel %vm281, %v357, 0.0
        %362 = vadd.xlane.f32.xlu0 %v361
        %v363 = vpop.xlane.xlu0 %362
        %v364 = vsub.f32 %v360, 1.0
        %v365 = vsub.f32 %v363, 1.0
        %v366 = vmul.f32 %v364, 2.0
        %v367 = vmul.f32 %v365, 2.0
        %v368 = vpack.c.bf16 %v367, %v366
        %v370 = vmul.bf16 %v368, 1069105081
        %v371 = vpow.bf16.pop %v370
        %v372 = vunpack.c.l.bf16 %v371
        %v373 = vunpack.c.h.bf16 %v371
        %v374 = vsub.f32 %v350, %v372
        %v375 = vsub.f32 %v353, %v373
        %v376 = vmax.f32 %v374, 1e-30
        %v377 = vmax.f32 %v375, 1e-30
        %v378 = vlog2.pop %v376
        %v379 = vmul.f32 %v378, 0.6931472
        %v380 = vlog2.pop %v377
        %v381 = vmul.f32 %v380, 0.6931472
        %v382 = vadd.f32 %v379, 2.0
        %v383 = vadd.f32 %v381, 2.0
        %vm384 = vcmask 7168
        %v385 = vsel %vm384, %v382, 0.0
        %v386 = vsel %vm384, %v383, 0.0
        %v387 = vadd.f32 %v385, %v386
        %388 = vadd.xlane.f32.xlu0 %v387
        %v389 = vpop.xlane.xlu0 %388
        %v390 = vrot.slane %v389, 4
        %v391 = vadd.f32 %v389, %v390
        %v392 = vrot.slane %v391, 2
        %v393 = vadd.f32 %v391, %v392
        %v394 = vrot.slane %v393, 1
        %v395 = vadd.f32 %v393, %v394
        %s396 = vtos %v395
        %v397 = vld [vmem:[%s213] sm:$0xf]
        %v398 = vld [vmem:[%s213 + $0x4] sm:$0xf]
        %v401 = vunpack.c.l.b16 %v397
        %v402 = vunpack.c.l.b16 %v398
        %v403 = vpack.c.b16 %v402, %v401
        %v405 = vsel %vm281, %v403, 0
        %407 = vmatprep.subr.bf16.mxu0 0
        %408 = vmatpush1.bf16.xpose.msra.mxu0 0
        %409 = vmatprep.subr.bf16.mxu0 0
        %410 = vmatpush1.bf16.xpose.msra.mxu0 0
        %411 = vmatprep.subr.bf16.mxu0 0
        %412 = vmatpush1.bf16.xpose.msra.mxu0 0
        %413 = vmatprep.subr.bf16.mxu0 0
        %414 = vmatpush1.bf16.xpose.msra.mxu0 0
        %415 = vmatprep.subr.bf16.mxu0 0
        %416 = vmatpush1.bf16.xpose.msra.mxu0 %v295
        %417 = vmatprep.subr.bf16.mxu0 0
        %418 = vmatpush1.bf16.xpose.msra.mxu0 %v292
        %419 = vmatprep.subr.bf16.mxu0 0
        %420 = vmatpush1.bf16.xpose.msra.mxu0 %v289
        %421 = vmatprep.subr.bf16.mxu0 0
        %422 = vmatpush1.bf16.xpose.msra.mxu0 %v286
        %423 = vmatprep.subr.bf16.mxu0 0
        %424 = vmatpush2.bf16.xpose.msra.mxu0 0
        %425 = vmatprep.subr.bf16.mxu0 0
        %426 = vmatpush2.bf16.xpose.msra.mxu0 0
        %427 = vmatprep.subr.bf16.mxu0 0
        %428 = vmatpush2.bf16.xpose.msra.mxu0 0
        %429 = vmatprep.subr.bf16.mxu0 0
        %430 = vmatpush2.bf16.xpose.msra.mxu0 0
        %431 = vmatprep.subr.bf16.mxu0 0
        %432 = vmatpush2.bf16.xpose.msra.mxu0 0
        %433 = vmatprep.subr.bf16.mxu0 0
        %434 = vmatpush2.bf16.xpose.msra.mxu0 0
        %435 = vmatprep.subr.bf16.mxu0 0
        %436 = vmatpush2.bf16.xpose.msra.mxu0 0
        %437 = vmatprep.subr.bf16.mxu0 0
        %438 = vmatpush2.bf16.xpose.msra.mxu0 0
        %439 = vmatprep.mubr.bf16.mxu0 0
        %440 = vmatmul.mubr.bf16.gmra.mxu0 %v405
        %v441 = vpop.f32.mrf.mxu0
        %v442 = vadd.f32 0.0, %v441
        %v443 = vpop.f32.mrf.mxu0
        %v444 = vpop.f32.mrf.mxu0
        %v445 = vadd.f32 0.0, %v444
        %v446 = vpop.f32.mrf.mxu0
        %447 = vdwg.mxu0
        %v448 = vsub.f32 %v442, 1.0
        %v449 = vsub.f32 %v445, 1.0
        %v450 = vmul.f32 %v448, 2.0
        %v451 = vmul.f32 %v449, 2.0
        %v452 = vpack.c.bf16 %v451, %v450
        %v454 = vmul.bf16 %v452, 1069105081
        %v455 = vpow.bf16.pop %v454
        %v456 = vunpack.c.l.bf16 %v455
        %v457 = vunpack.c.h.bf16 %v455
        %v458 = vsel %vm281, %v456, 0.0
        %459 = vadd.xlane.f32.xlu0 %v458
        %v460 = vpop.xlane.xlu0 %459
        %v461 = vsel %vm281, %v457, 0.0
        %462 = vadd.xlane.f32.xlu0 %v461
        %v463 = vpop.xlane.xlu0 %462
        %v464 = vunpack.c.l.bf16 %v397
        %v465 = vunpack.c.l.bf16 %v398
        %v466 = vmul.f32 %v464, %v464
        %v467 = vmul.f32 %v465, %v465
        %v468 = vsel %vm281, %v466, 0.0
        %469 = vadd.xlane.f32.xlu0 %v468
        %v470 = vpop.xlane.xlu0 %469
        %v471 = vsel %vm281, %v467, 0.0
        %472 = vadd.xlane.f32.xlu0 %v471
        %v473 = vpop.xlane.xlu0 %472
        %v474 = vsub.f32 %v470, 1.0
        %v475 = vsub.f32 %v473, 1.0
        %v476 = vmul.f32 %v474, 2.0
        %v477 = vmul.f32 %v475, 2.0
        %v478 = vpack.c.bf16 %v477, %v476
        %v480 = vmul.bf16 %v478, 1069105081
        %v481 = vpow.bf16.pop %v480
        %v482 = vunpack.c.l.bf16 %v481
        %v483 = vunpack.c.h.bf16 %v481
        %v484 = vsub.f32 %v460, %v482
        %v485 = vsub.f32 %v463, %v483
        %v486 = vmax.f32 %v484, 1e-30
        %v487 = vmax.f32 %v485, 1e-30
        %v488 = vlog2.pop %v486
        %v489 = vmul.f32 %v488, 0.6931472
        %v490 = vlog2.pop %v487
        %v491 = vmul.f32 %v490, 0.6931472
        %v492 = vadd.f32 %v489, 2.0
        %v493 = vadd.f32 %v491, 2.0
        %v494 = vsel %vm384, %v492, 0.0
        %v495 = vsel %vm384, %v493, 0.0
        %v496 = vadd.f32 %v494, %v495
        %497 = vadd.xlane.f32.xlu0 %v496
        %v498 = vpop.xlane.xlu0 %497
        %v499 = vrot.slane %v498, 4
        %v500 = vadd.f32 %v498, %v499
        %v501 = vrot.slane %v500, 2
        %v502 = vadd.f32 %v500, %v501
        %v503 = vrot.slane %v502, 1
        %v504 = vadd.f32 %v502, %v503
        %s505 = vtos %v504
        %v506 = vmul.f32 %v354, %v464
        %v507 = vmul.f32 %v355, %v465
        %v508 = vsel %vm281, %v506, 0.0
        %v509 = vsel %vm281, %v507, 0.0
        %v510 = vadd.f32 %v508, %v509
        %511 = vadd.xlane.f32.xlu0 %v510
        %v512 = vpop.xlane.xlu0 %511
        %v513 = vrot.slane %v512, 4
        %v514 = vadd.f32 %v512, %v513
        %v515 = vrot.slane %v514, 2
        %v516 = vadd.f32 %v514, %v515
        %v517 = vrot.slane %v516, 1
        %v518 = vadd.f32 %v516, %v517
        %s519 = vtos %v518
        %s520 = smul.f32 %s519, 2.0
        %s521 = sadd.f32 %s396, %s505
        %s522 = smul.f32 %s520, 2.0
        %s523 = ssub.f32 %s521, %s522
        %v524 = vstv %s523
        %vm525 = vcmask 0
        %526 = vst.msk [vmem:[%s244] sm:$0x1] %vm525, %v524
        %p527 = scmp.lt.s32.totalorder %s18, 1
        %s528 = scalar_select %p527, %s18, 1
        %s529 = scalar_lea.vmem %s3, %s528
        // Predicated region
        $region45: #{tpu_custom_call.1} parent=31 // pred_check
          %p530 = pneg %p111
        $region46: #{tpu_custom_call.1} parent=31 // pred_check_branch
          %532 = sbr.rel (%p530) target = $region48
        $region47: #{tpu_custom_call.1} parent=31 // pred_region
          _
        $region48: #{tpu_custom_call.1} parent=31 // pred_fallthru
          _
      $region32: #{tpu_custom_call.1} parent=5 // pred_fallthru
        _
      %p533 = scmp.le.s32.totalorder 2, %s13
      // Predicated region
      $region49: #{tpu_custom_call.1} parent=5 // pred_check
        %p534 = pneg %p533
      $region50: #{tpu_custom_call.1} parent=5 // pred_check_branch
        %536 = sbr.rel (%p534) target = $region52
      $region51: #{tpu_custom_call.1} parent=5 // pred_region
        %s537 = ssub.s32 %s13, 2
        // Predicated region
        $region53: #{tpu_custom_call.1} parent=51 // pred_check
          %p538 = pneg %p117
        $region54: #{tpu_custom_call.1} parent=51 // pred_check_branch
          %540 = sbr.rel (%p538) target = $region56
        $region55: #{tpu_custom_call.1} parent=51 // pred_region
          %p541 = scmp.lt.s32.totalorder %s19, 1
          %s542 = scalar_select %p541, %s19, 1
          %s543 = scalar_lea.vmem %s3, %s542
        $region56: #{tpu_custom_call.1} parent=51 // pred_fallthru
          _
      $region52: #{tpu_custom_call.1} parent=5 // pred_fallthru
        _
    $region6: #{tpu_custom_call.1} parent=1 // loop_footer
      %s17 = sadd.s32 1, %s13
    $region7: #{tpu_custom_call.1} parent=1 // loop_footer_branch
      %12 = sbr.rel target = $region3
    $region8: #{tpu_custom_call.1} parent=1 // loop_exit
      _
    %544 = vsyncpa [#allocation3], 1
    %s545 = scalar_lea.sflag [#allocation3], 1
    %546 = vsyncpa %s545, 1
    %547 = vsyncpa [#allocation5], 1
    %s548 = scalar_lea.sflag [#allocation5], 1
    %549 = vsyncpa %s548, 1

</llo_original>
